<compile_context>
chip_gen: v5e
topology: v5e:2x2
jax: 0.10.0
libtpu: 0.0.40
codegen_flags: <defaults>
</compile_context>

<pallas_src>
import jax
import jax.numpy as jnp
from jax.experimental import pallas as pl
from jax.experimental.pallas import tpu as pltpu


def _round_up(n, m):
    return ((n + m - 1) // m) * m


def _mtlr_kernel(xt_ref, eb_ref, wx_ref, out_ref):
    """One batch tile (batch on the lane axis).

    xt_ref:  (x_dim, TB) f32 VMEM   x tile, transposed
    eb_ref:  (1, TB)     f32 VMEM   per-row embedding-logit + bias
    wx_ref:  (x_dim, 1)  f32 VMEM   x-part of the linear weight (resident)
    out_ref: (1, TB)     f32 VMEM   lane-dense output slab
    """
    # VPU multiply (lane broadcast of wx) + sublane reduce -> (1, TB), already
    # lane-dense for the unmasked output store.
    x_part = jnp.sum(xt_ref[...] * wx_ref[...], axis=0, keepdims=True)
    out_ref[...] = jax.nn.sigmoid(x_part + eb_ref[...])
    # TODO(synk): for x_dim >= ~256 an MXU matvec (jnp.dot(wx.T, x_tile)) would
    # beat the VPU multiply + sublane reduce; unnecessary at x_dim = 32.


def multi_task_logreg_forward(x, neuron_ids, embed_table, linear_w, linear_b,
                              *, tb=512):
    """Forward pass of MultiTaskLogRegModel.

    x:           (B, x_dim)       float
    neuron_ids:  (B,)             int
    embed_table: (n_neurons, E)   float   (nn.Embedding weight)
    linear_w:    (1, x_dim + E)   float   (nn.Linear weight)
    linear_b:    (1,)             float   (nn.Linear bias)
    returns:     (B,)             float32
    """
    B, x_dim = x.shape
    n_neurons, E = embed_table.shape

    x = x.astype(jnp.float32)
    embed_table = embed_table.astype(jnp.float32)
    linear_w = linear_w.astype(jnp.float32)
    linear_b = linear_b.astype(jnp.float32)

    # ---- algebraic fold (plain JAX, O(n_neurons * E) once) -----------------
    #   sigmoid(cat([x, table[id]]) @ W.T + b)
    #     == sigmoid(x @ wx.T + (table @ we.T)[id] + b)
    we = linear_w[0, x_dim:]                         # (E,)
    emb_logit = embed_table @ we                     # (n_neurons,)
    # PyTorch Embedding raises on out-of-range ids; clamp only for memory safety.
    ids = jnp.clip(neuron_ids.astype(jnp.int32), 0, n_neurons - 1)
    eb = emb_logit[ids] + linear_b[0]                # (B,): gathered + bias folded

    # ---- tiling: batch on the lane axis -------------------------------------
    tb = _round_up(min(int(tb), _round_up(B, 128)), 128)
    num_tiles = pl.cdiv(B, tb)
    b_pad = num_tiles * tb

    # Padded lanes carry x=0, eb=0 -> sigmoid(0)=0.5; sliced off below.
    xt = jnp.pad(x.T, ((0, 0), (0, b_pad - B)))              # (x_dim, B_pad)
    eb_p = jnp.pad(eb, (0, b_pad - B)).reshape(1, b_pad)     # (1, B_pad)
    wx_col = linear_w[0, :x_dim].reshape(x_dim, 1)           # (x_dim, 1)

    # TODO(synk): on v6e/v7x, stream xt/eb as bf16 (f32 accumulate in-kernel) to
    # halve HBM bytes on the dominant stream; kept f32 to match the f32 reference.

    out = pl.pallas_call(
        _mtlr_kernel,
        out_shape=jax.ShapeDtypeStruct((1, b_pad), jnp.float32),
        grid_spec=pltpu.PrefetchScalarGridSpec(
            num_scalar_prefetch=0,
            grid=(num_tiles,),
            in_specs=[
                pl.BlockSpec((x_dim, tb), lambda i: (0, i)),   # x tile (transposed)
                pl.BlockSpec((1, tb), lambda i: (0, i)),       # emb logit + bias
                pl.BlockSpec((x_dim, 1), lambda i: (0, 0)),    # wx column (resident)
            ],
            out_specs=pl.BlockSpec((1, tb), lambda i: (0, i)), # lane-dense output
        ),
        compiler_params=pltpu.CompilerParams(
            dimension_semantics=("parallel",),   # shard batch tiles across TCs (v7x)
        ),
    )(xt, eb_p, wx_col)

    return out[0, :B]   # squeeze(-1) -> (B,)


def _reference(x, neuron_ids, embed_table, linear_w, linear_b):
    nvec = embed_table[neuron_ids]                       # (B, E)
    x_all = jnp.concatenate([x, nvec], axis=1)           # (B, D)
    logits = x_all @ linear_w.T + linear_b               # (B, 1)
    return jax.nn.sigmoid(logits)[:, 0]


if __name__ == "__main__":
    # Small, deterministic setup.
    B, x_dim, n_neurons, E = 8, 32, 10, 16
    key = jax.random.PRNGKey(0)
    k_x, k_id, k_emb, k_w, k_b = jax.random.split(key, 5)

    x = jax.random.normal(k_x, (B, x_dim), dtype=jnp.float32)
    neuron_ids = jax.random.randint(k_id, (B,), 0, n_neurons, dtype=jnp.int32)

    # Deterministic parameter init (synthetic, matching module shapes):
    #   nn.Embedding(n_neurons, E).weight -> (n_neurons, E)
    #   nn.Linear(x_dim + E, 1).weight    -> (1, x_dim + E), bias -> (1,)
    embed_table = jax.random.normal(k_emb, (n_neurons, E), dtype=jnp.float32)
    bound = 1.0 / jnp.sqrt(jnp.float32(x_dim + E))
    linear_w = jax.random.uniform(k_w, (1, x_dim + E), minval=-bound, maxval=bound,
                                  dtype=jnp.float32)
    linear_b = jax.random.uniform(k_b, (1,), minval=-bound, maxval=bound,
                                  dtype=jnp.float32)

    out = multi_task_logreg_forward(x, neuron_ids, embed_table, linear_w, linear_b)
    out = jax.block_until_ready(out)

    ref = _reference(x, neuron_ids, embed_table, linear_w, linear_b)
    assert out.shape == (B,)
    assert jnp.allclose(out, ref, atol=1e-5, rtol=1e-5)

    print("KERNEL_OK")
</pallas_src>

<mosaic_0001>
module attributes {stable_mosaic.version = 11 : i64} {
  func.func @_mtlr_kernel(%arg0: i32, %arg1: memref<32x128xf32, #tpu.memory_space<vmem>>, %arg2: memref<1x128xf32, #tpu.memory_space<vmem>>, %arg3: memref<32x1xf32, #tpu.memory_space<vmem>>, %arg4: memref<1x128xf32, #tpu.memory_space<vmem>>) attributes {dimension_semantics = [#tpu.dimension_semantics<parallel>], iteration_bounds = array<i64: 1>, scalar_prefetch = 0 : i64, scratch_operands = 0 : i64, tpu.core_type = #tpu.core_type<tc>, window_params = [{transform_indices = @transform_0, window_bounds = array<i64: 32, 128>}, {transform_indices = @transform_1, window_bounds = array<i64: 1, 128>}, {pipeline_mode = #tpu.pipeline_mode<synchronous>, transform_indices = @transform_2, window_bounds = array<i64: 32, 1>}, {transform_indices = @transform_3, window_bounds = array<i64: 1, 128>}]} {
    %c0 = arith.constant 0 : index
    %c0_0 = arith.constant 0 : index
    %0 = vector.load %arg1[%c0, %c0_0] : memref<32x128xf32, #tpu.memory_space<vmem>>, vector<32x128xf32>
    %c0_1 = arith.constant 0 : index
    %c0_2 = arith.constant 0 : index
    %1 = vector.load %arg3[%c0_1, %c0_2] : memref<32x1xf32, #tpu.memory_space<vmem>>, vector<32x1xf32>
    %2 = vector.broadcast %1 : vector<32x1xf32> to vector<32x128xf32>
    %3 = arith.mulf %0, %2 : vector<32x128xf32>
    %cst = arith.constant dense<0.000000e+00> : vector<128xf32>
    %4 = vector.multi_reduction <add>, %3, %cst [0] : vector<32x128xf32> to vector<128xf32>
    %5 = vector.shape_cast %4 : vector<128xf32> to vector<1x128xf32>
    %c0_3 = arith.constant 0 : index
    %c0_4 = arith.constant 0 : index
    %6 = vector.load %arg2[%c0_3, %c0_4] : memref<1x128xf32, #tpu.memory_space<vmem>>, vector<1x128xf32>
    %7 = arith.addf %5, %6 : vector<1x128xf32>
    %8 = arith.negf %7 : vector<1x128xf32>
    %9 = math.exp %8 : vector<1x128xf32>
    %cst_5 = arith.constant 1.000000e+00 : f32
    %10 = vector.broadcast %cst_5 : f32 to vector<1x128xf32>
    %11 = arith.addf %10, %9 : vector<1x128xf32>
    %12 = arith.divf %10, %11 : vector<1x128xf32>
    %c0_6 = arith.constant 0 : index
    %c0_7 = arith.constant 0 : index
    %13 = vector.load %arg4[%c0_6, %c0_7] : memref<1x128xf32, #tpu.memory_space<vmem>>, vector<1x128xf32>
    tpu.vector_store %arg4[%c0_6, %c0_7], %12 {strides = array<i32>} : memref<1x128xf32, #tpu.memory_space<vmem>>, vector<1x128xf32>,
    return
  }
  func.func @transform_0(%arg0: i32) -> (i32, i32) {
    %c0_i32 = arith.constant 0 : i32
    %c0_i32_0 = arith.constant 0 : i32
    return %c0_i32, %arg0 : i32, i32
  }
  func.func @transform_1(%arg0: i32) -> (i32, i32) {
    %c0_i32 = arith.constant 0 : i32
    %c0_i32_0 = arith.constant 0 : i32
    return %c0_i32, %arg0 : i32, i32
  }
  func.func @transform_2(%arg0: i32) -> (i32, i32) {
    %c0_i32 = arith.constant 0 : i32
    %c0_i32_0 = arith.constant 0 : i32
    %c0_i32_1 = arith.constant 0 : i32
    return %c0_i32, %c0_i32_0 : i32, i32
  }
  func.func @transform_3(%arg0: i32) -> (i32, i32) {
    %c0_i32 = arith.constant 0 : i32
    %c0_i32_0 = arith.constant 0 : i32
    return %c0_i32, %arg0 : i32, i32
  }
}

</mosaic_0001>

<llo_original>
// kernel: tpu_custom_call.1
$region0: #{tpu_custom_call.1}
  #allocation0 [shape = 'u32[]', space=smem, size = 0x4, offset = 0x4, fixed_abs, tag = 'smem constant byte address 0x4 - core index']
  #allocation1 [shape = 'u32[72,128]{1,0:T(1,128)}', space=vmem, size = 0x9000, scoped, tag = 'internal scratch']
  %s0 = inlined_call_operand.vmem [shape: f32[32,128], index: 0, kind: input, shape index: {}]
  %s1 = inlined_call_operand.vmem [shape: f32[1,128], index: 1, kind: input, shape index: {}]
  %s2 = inlined_call_operand.vmem [shape: f32[32,1], index: 2, kind: input, shape index: {}]
  %s3 = inlined_call_operand.hbm [shape: f32[1,128], index: 3, kind: output, shape index: {}]
  %s4 = sld [smem:[#allocation0]]
  $region22: #{tpu_custom_call.1} parent=0
    _
  %s6 = ssub.s32 1, %s4
  %s7 = scalar_select 0, %s6, %s4
  $region1: #{tpu_custom_call.1} parent=0
    #allocation2 [shape = 'u8[512]{0}', space=vmem, size = 0x400, scoped, tag = 'output window, operand 0, single buffered']
    #allocation3 [shape = 's32[1]{0}', space=sflag, size = 0x4, scoped, tag = 'scoped memory for tpu_custom_call.1']
    %8 = vsyncpa [#allocation3], 0
    // Predicated region
    $region2: #{tpu_custom_call.1} parent=1 // pred_check
      _
    $region3: #{tpu_custom_call.1} parent=1 // pred_check_branch
      %10 = sbr.rel (0) target = $region5
    $region4: #{tpu_custom_call.1} parent=1 // pred_region
      _
    $region5: #{tpu_custom_call.1} parent=1 // pred_fallthru
      _
    // Predicated region
    $region6: #{tpu_custom_call.1} parent=1 // pred_check
      _
    $region7: #{tpu_custom_call.1} parent=1 // pred_check_branch
      %12 = sbr.rel (0) target = $region9
    $region8: #{tpu_custom_call.1} parent=1 // pred_region
      _
    $region9: #{tpu_custom_call.1} parent=1 // pred_fallthru
      _
    // Predicated region
    $region10: #{tpu_custom_call.1} parent=1 // pred_check
      _
    $region11: #{tpu_custom_call.1} parent=1 // pred_check_branch
      %14 = sbr.rel (0) target = $region13
    $region12: #{tpu_custom_call.1} parent=1 // pred_region
      _
    $region13: #{tpu_custom_call.1} parent=1 // pred_fallthru
      _
    %v15 = vld [vmem:[%s0] sm:$0xff]
    %v16 = vld [vmem:[%s0 + $0x8] sm:$0xff]
    %v17 = vld [vmem:[%s0 + $0x10] sm:$0xff]
    %v18 = vld [vmem:[%s0 + $0x18] sm:$0xff]
    %v19 = vld [vmem:[%s2] sm:$0xff]
    %v20 = vld [vmem:[%s2 + $0x8] sm:$0xff]
    %v21 = vld [vmem:[%s2 + $0x10] sm:$0xff]
    %v22 = vld [vmem:[%s2 + $0x18] sm:$0xff]
    %24 = vset.pattern.permute.xlu0 0
    %25 = vperm.xlu0 %24, %v19
    %v26 = vpop.permute.xlu0 %25
    %29 = vset.pattern.permute.xlu0 0
    %30 = vperm.xlu0 %29, %v20
    %v31 = vpop.permute.xlu0 %30
    %34 = vset.pattern.permute.xlu0 0
    %35 = vperm.xlu0 %34, %v21
    %v36 = vpop.permute.xlu0 %35
    %39 = vset.pattern.permute.xlu0 0
    %40 = vperm.xlu0 %39, %v22
    %v41 = vpop.permute.xlu0 %40
    %v43 = vmul.f32 %v15, %v26
    %v44 = vmul.f32 %v16, %v31
    %v45 = vmul.f32 %v17, %v36
    %v46 = vmul.f32 %v18, %v41
    %v47 = vadd.f32 %v43, %v44
    %v48 = vadd.f32 %v47, %v45
    %v49 = vadd.f32 %v48, %v46
    %v50 = vrot.slane %v49, 4
    %v51 = vadd.f32 %v49, %v50
    %v52 = vrot.slane %v51, 2
    %v53 = vadd.f32 %v51, %v52
    %v54 = vrot.slane %v53, 1
    %v55 = vadd.f32 %v53, %v54
    %v56 = vld [vmem:[%s1] sm:$0x1]
    %v57 = vadd.f32 %v55, %v56
    %v58 = vxor.u32 %v57, 2147483648
    %v59 = vmul.f32 %v58, 1.442695
    %v60 = vpow.pop %v59
    %v61 = vadd.f32 %v60, 1.0
    %v62 = vrcp.pop %v61
    %v63 = vmul.f32 %v61, %v62
    %v64 = vsub.f32 1.0, %v63
    %v65 = vmul.f32 %v62, %v64
    %v66 = vadd.f32 %v62, %v65
    %vm67 = vweird.f32 %v61
    %vm68 = vweird.f32 %v62
    %vm69 = vmor %vm67, %vm68
    %v70 = vsel %vm69, %v62, %v66
    %v71 = vand.u32 2147483647, %v61
    %vm72 = vcmp.eq.f32.partialorder %v71, 8.507059e+37
    %v73 = vand.u32 %v61, 2147483648
    %v74 = vor.u32 1.1754944e-38, %v73
    %v75 = vsel %vm72, %v74, %v70
    %v76 = vmul.f32 1.0, %v75
    %77 = vst [vmem:[#allocation2] sm:$0x1] %v76
    // Predicated region
    $region14: #{tpu_custom_call.1} parent=1 // pred_check
      _
    $region15: #{tpu_custom_call.1} parent=1 // pred_check_branch
      %79 = sbr.rel (0) target = $region17
    $region16: #{tpu_custom_call.1} parent=1 // pred_region
      %81 = vsyncadd [#allocation3], 0
      %s83 = sshll.u32 [#allocation2], 4
      %s84 = int_to_ptr.vmem [resolvable:$true] %s83
      %s85 = sshll.u32 %s3, 4
      %s86 = int_to_ptr.hbm [resolvable:$true] %s85
      %88 = dma.vmem_to_hbm [thread:$0]  %s84, 16, %s86, [#allocation3]
    $region17: #{tpu_custom_call.1} parent=1 // pred_fallthru
      _
    // Predicated region
    $region18: #{tpu_custom_call.1} parent=1 // pred_check
      _
    $region19: #{tpu_custom_call.1} parent=1 // pred_check_branch
      %90 = sbr.rel (0) target = $region21
    $region20: #{tpu_custom_call.1} parent=1 // pred_region
      %92 = dma.done [#allocation3], 16
    $region21: #{tpu_custom_call.1} parent=1 // pred_fallthru
      _
    %93 = vsyncpa [#allocation3], 1

</llo_original>
